<compile_context>
chip_gen: v7x
topology: tpu7x:2x2x1
jax: 0.10.0
libtpu: 0.0.40
codegen_flags: <defaults>
</compile_context>

<pallas_src>
import functools

import jax
import jax.numpy as jnp
from jax.experimental import pallas as pl
from jax.experimental.pallas import tpu as pltpu

LANE = 128  # TPU lane width; feature dims are padded to this.


def _round_up(n, m):
    return ((n + m - 1) // m) * m


def _fused_mlp_kernel(x_ref, *refs, n_layers):
    """refs = (w1, b1, w2, b2, ..., wn, bn, o_ref).

    Chains all Linear(+ReLU) layers on one batch tile; intermediates stay in
    vregs / VMEM (every padded width is tiny at these sizes).
    """
    o_ref = refs[-1]
    h = x_ref[...]  # bf16 (TILE_B, D_in_pad)
    acc = None
    for i in range(n_layers):
        w_ref = refs[2 * i]
        b_ref = refs[2 * i + 1]
        acc = jnp.dot(h, w_ref[...], preferred_element_type=jnp.float32)
        acc = acc + b_ref[...]  # (1, D_out_pad) f32 bias broadcasts over rows
        if i != n_layers - 1:
            acc = jnp.maximum(acc, 0.0)          # ReLU in f32 (v5e-friendly)
            h = acc.astype(jnp.bfloat16)         # feed next MXU pass in bf16
    o_ref[...] = acc.astype(o_ref.dtype)         # bf16 store (lane-dense slab)


def prepare_params(params):
    """One-time pad+cast of the weights/biases (hoisted out of the hot path).

    params: list of (w (D_in, D_out) f32, b (1, D_out) or (D_out,) f32).
    Returns list of (w_pad bf16 (D_in_pad, D_out_pad), b_pad f32 (1, D_out_pad)).
    Zero-padded weight rows/cols and zero bias in padded lanes keep the live
    columns exact; ReLU(0)=0 keeps padded activations zero through the chain.
    """
    padded = []
    d_prev_true = params[0][0].shape[0]
    d_prev_pad = _round_up(d_prev_true, LANE)
    for w, b in params:
        d_out = w.shape[1]
        dp = _round_up(d_out, LANE)
        w_p = jnp.pad(w.astype(jnp.bfloat16),
                      ((0, d_prev_pad - d_prev_true), (0, dp - d_out)))
        b_p = jnp.pad(b.astype(jnp.float32).reshape(1, -1),
                      ((0, 0), (0, dp - d_out)))
        padded.append((w_p, b_p))
        d_prev_true, d_prev_pad = d_out, dp
    return padded


def mlp_forward(x, padded_params, *, d_in, out_dim):
    """Flatten -> fused (Linear+ReLU)*N -> Linear, dropout = identity (eval).

    x: (B, input_size, forcast_range); padded_params from prepare_params().
    """
    B = x.shape[0]
    h = x.reshape(B, -1).astype(jnp.bfloat16)  # nn.Flatten + cast
    assert h.shape[1] == d_in, (h.shape, d_in)

    n_layers = len(padded_params)
    d_in_pad = padded_params[0][0].shape[0]
    d_out_pad = padded_params[-1][0].shape[1]

    # ---- batch tiling: one tile for small B, else an even number of large
    # tiles (~256 rows) so the 2 v7x TensorCores get equal work. ----
    if B <= 256:
        n_tiles = 1
    else:
        n_tiles = 2 * max(1, int(round(B / 512)))
    tile_b = _round_up(pl.cdiv(B, n_tiles), 16)  # bf16-friendly sublane mult
    b_pad = tile_b * n_tiles

    # Single pad op (fuses with the cast) instead of zeros + scatter.
    x_p = jnp.pad(h, ((0, b_pad - B), (0, d_in_pad - d_in)))

    flat_inputs = [x_p]
    in_specs = [pl.BlockSpec((tile_b, d_in_pad), lambda i: (i, 0))]
    for w_p, b_p in padded_params:
        flat_inputs.extend([w_p, b_p])
        # Constant index maps -> weights/biases stay VMEM-resident across grid.
        in_specs.append(pl.BlockSpec(w_p.shape, lambda i: (0, 0)))
        in_specs.append(pl.BlockSpec(b_p.shape, lambda i: (0, 0)))

    # Right-size the VMEM limit to the real footprint (double-buffered I/O
    # tiles + resident params), with generous headroom.
    bytes_io = 2 * (tile_b * d_in_pad * 2 + tile_b * d_out_pad * 2)
    bytes_par = 2 * sum(int(a.size) * a.dtype.itemsize
                        for wp, bp in padded_params for a in (wp, bp))
    vmem_limit = min(100 << 20,
                     max(4 << 20, _round_up(2 * (bytes_io + bytes_par), 1 << 20)))

    out = pl.pallas_call(
        functools.partial(_fused_mlp_kernel, n_layers=n_layers),
        out_shape=jax.ShapeDtypeStruct((b_pad, d_out_pad), jnp.bfloat16),
        grid=(n_tiles,),
        in_specs=in_specs,
        out_specs=pl.BlockSpec((tile_b, d_out_pad), lambda i: (i, 0)),
        compiler_params=pltpu.CompilerParams(
            dimension_semantics=("parallel",),
            vmem_limit_bytes=int(vmem_limit),
        ),
    )(*flat_inputs)

    return out[:B, :out_dim].astype(x.dtype)


def init_mlp_params(key, input_size, hidden_layers, output_size, forcast_range):
    """Deterministic parameter init mirroring the PyTorch module's shapes."""
    params = []
    d_in = input_size * forcast_range
    dims = list(hidden_layers) + [output_size]
    for d_out in dims:
        key, kw, kb = jax.random.split(key, 3)
        bound = 1.0 / jnp.sqrt(d_in)
        w = jax.random.uniform(kw, (d_in, d_out), jnp.float32, -bound, bound)
        b = jax.random.uniform(kb, (1, d_out), jnp.float32, -bound, bound)
        params.append((w, b))
        d_in = d_out
    return params


def mlp_reference(x, params):
    """Pure-JAX reference with the same bf16-in / f32-accumulate / bf16-out math."""
    B = x.shape[0]
    h = x.reshape(B, -1).astype(jnp.bfloat16)
    n_layers = len(params)
    acc = None
    for i, (w, b) in enumerate(params):
        acc = jnp.dot(h, w.astype(jnp.bfloat16),
                      preferred_element_type=jnp.float32) + b.reshape(1, -1)
        if i != n_layers - 1:
            h = jnp.maximum(acc, 0.0).astype(jnp.bfloat16)
    return acc.astype(jnp.bfloat16).astype(x.dtype)


if __name__ == "__main__":
    # Small shapes consistent with the module's forward:
    #   input_size=8, forcast_range=4  -> flattened D_in = 32
    #   hidden_layers=[64, 32], output_size=16, batch=8
    input_size = 8
    forcast_range = 4
    hidden_layers = [64, 32]
    output_size = 16
    batch = 8

    key = jax.random.PRNGKey(0)
    key, kx = jax.random.split(key)
    x = jax.random.normal(kx, (batch, input_size, forcast_range), jnp.float32)
    params = init_mlp_params(key, input_size, hidden_layers, output_size,
                             forcast_range)

    # One-time parameter preparation (hoisted out of the forward path).
    padded_params = jax.block_until_ready(prepare_params(params))

    d_in = input_size * forcast_range
    fwd = jax.jit(functools.partial(mlp_forward, d_in=d_in, out_dim=output_size))

    out = jax.block_until_ready(fwd(x, padded_params))
    ref = mlp_reference(x, params)
    assert out.shape == (batch, output_size), out.shape
    assert jnp.allclose(out, ref, atol=1e-2, rtol=1e-2), "mismatch vs reference"

    # Second check: batch large enough to exercise the (even) batch grid + row padding.
    key, kx2 = jax.random.split(key)
    x2 = jax.random.normal(kx2, (300, input_size, forcast_range), jnp.float32)
    out2 = jax.block_until_ready(fwd(x2, padded_params))
    ref2 = mlp_reference(x2, params)
    assert out2.shape == (300, output_size), out2.shape
    assert jnp.allclose(out2, ref2, atol=1e-2, rtol=1e-2), "mismatch (grid path)"

    print("KERNEL_OK")
</pallas_src>

<mosaic_0001>
module attributes {stable_mosaic.version = 11 : i64} {
  func.func @_fused_mlp_kernel(%arg0: i32, %arg1: memref<16x128xbf16, #tpu.memory_space<vmem>>, %arg2: memref<128x128xbf16, #tpu.memory_space<vmem>>, %arg3: memref<1x128xf32, #tpu.memory_space<vmem>>, %arg4: memref<128x128xbf16, #tpu.memory_space<vmem>>, %arg5: memref<1x128xf32, #tpu.memory_space<vmem>>, %arg6: memref<128x128xbf16, #tpu.memory_space<vmem>>, %arg7: memref<1x128xf32, #tpu.memory_space<vmem>>, %arg8: memref<16x128xbf16, #tpu.memory_space<vmem>>) attributes {dimension_semantics = [#tpu.dimension_semantics<parallel>], iteration_bounds = array<i64: 1>, scalar_prefetch = 0 : i64, scratch_operands = 0 : i64, tpu.core_type = #tpu.core_type<tc>, window_params = [{transform_indices = @transform_0, window_bounds = array<i64: 16, 128>}, {pipeline_mode = #tpu.pipeline_mode<synchronous>, transform_indices = @transform_1, window_bounds = array<i64: 128, 128>}, {pipeline_mode = #tpu.pipeline_mode<synchronous>, transform_indices = @transform_2, window_bounds = array<i64: 1, 128>}, {pipeline_mode = #tpu.pipeline_mode<synchronous>, transform_indices = @transform_3, window_bounds = array<i64: 128, 128>}, {pipeline_mode = #tpu.pipeline_mode<synchronous>, transform_indices = @transform_4, window_bounds = array<i64: 1, 128>}, {pipeline_mode = #tpu.pipeline_mode<synchronous>, transform_indices = @transform_5, window_bounds = array<i64: 128, 128>}, {pipeline_mode = #tpu.pipeline_mode<synchronous>, transform_indices = @transform_6, window_bounds = array<i64: 1, 128>}, {transform_indices = @transform_7, window_bounds = array<i64: 16, 128>}]} {
    %c0 = arith.constant 0 : index
    %c0_0 = arith.constant 0 : index
    %0 = vector.load %arg1[%c0, %c0_0] : memref<16x128xbf16, #tpu.memory_space<vmem>>, vector<16x128xbf16>
    %c0_1 = arith.constant 0 : index
    %c0_2 = arith.constant 0 : index
    %1 = vector.load %arg2[%c0_1, %c0_2] : memref<128x128xbf16, #tpu.memory_space<vmem>>, vector<128x128xbf16>
    %cst = arith.constant dense<0.000000e+00> : vector<16x128xf32>
    %2 = tpu.matmul %0, %1, %cst {dimension_numbers = #tpu.dot_dimension_numbers<[1], [0], [0], [1], [0, 0, 1, 1], [], []>} : vector<16x128xbf16>, vector<128x128xbf16>, vector<16x128xf32> -> vector<16x128xf32>
    %c0_3 = arith.constant 0 : index
    %c0_4 = arith.constant 0 : index
    %3 = vector.load %arg3[%c0_3, %c0_4] : memref<1x128xf32, #tpu.memory_space<vmem>>, vector<1x128xf32>
    %4 = vector.broadcast %3 : vector<1x128xf32> to vector<16x128xf32>
    %5 = arith.addf %2, %4 : vector<16x128xf32>
    %cst_5 = arith.constant 0.000000e+00 : f32
    %6 = vector.broadcast %cst_5 : f32 to vector<16x128xf32>
    %7 = arith.maximumf %5, %6 : vector<16x128xf32>
    %8 = arith.truncf %7 : vector<16x128xf32> to vector<16x128xbf16>
    %c0_6 = arith.constant 0 : index
    %c0_7 = arith.constant 0 : index
    %9 = vector.load %arg4[%c0_6, %c0_7] : memref<128x128xbf16, #tpu.memory_space<vmem>>, vector<128x128xbf16>
    %cst_8 = arith.constant dense<0.000000e+00> : vector<16x128xf32>
    %10 = tpu.matmul %8, %9, %cst_8 {dimension_numbers = #tpu.dot_dimension_numbers<[1], [0], [0], [1], [0, 0, 1, 1], [], []>} : vector<16x128xbf16>, vector<128x128xbf16>, vector<16x128xf32> -> vector<16x128xf32>
    %c0_9 = arith.constant 0 : index
    %c0_10 = arith.constant 0 : index
    %11 = vector.load %arg5[%c0_9, %c0_10] : memref<1x128xf32, #tpu.memory_space<vmem>>, vector<1x128xf32>
    %12 = vector.broadcast %11 : vector<1x128xf32> to vector<16x128xf32>
    %13 = arith.addf %10, %12 : vector<16x128xf32>
    %cst_11 = arith.constant 0.000000e+00 : f32
    %14 = vector.broadcast %cst_11 : f32 to vector<16x128xf32>
    %15 = arith.maximumf %13, %14 : vector<16x128xf32>
    %16 = arith.truncf %15 : vector<16x128xf32> to vector<16x128xbf16>
    %c0_12 = arith.constant 0 : index
    %c0_13 = arith.constant 0 : index
    %17 = vector.load %arg6[%c0_12, %c0_13] : memref<128x128xbf16, #tpu.memory_space<vmem>>, vector<128x128xbf16>
    %cst_14 = arith.constant dense<0.000000e+00> : vector<16x128xf32>
    %18 = tpu.matmul %16, %17, %cst_14 {dimension_numbers = #tpu.dot_dimension_numbers<[1], [0], [0], [1], [0, 0, 1, 1], [], []>} : vector<16x128xbf16>, vector<128x128xbf16>, vector<16x128xf32> -> vector<16x128xf32>
    %c0_15 = arith.constant 0 : index
    %c0_16 = arith.constant 0 : index
    %19 = vector.load %arg7[%c0_15, %c0_16] : memref<1x128xf32, #tpu.memory_space<vmem>>, vector<1x128xf32>
    %20 = vector.broadcast %19 : vector<1x128xf32> to vector<16x128xf32>
    %21 = arith.addf %18, %20 : vector<16x128xf32>
    %22 = arith.truncf %21 : vector<16x128xf32> to vector<16x128xbf16>
    %c0_17 = arith.constant 0 : index
    %c0_18 = arith.constant 0 : index
    %23 = vector.load %arg8[%c0_17, %c0_18] : memref<16x128xbf16, #tpu.memory_space<vmem>>, vector<16x128xbf16>
    tpu.vector_store %arg8[%c0_17, %c0_18], %22 {strides = array<i32>} : memref<16x128xbf16, #tpu.memory_space<vmem>>, vector<16x128xbf16>,
    return
  }
  func.func @transform_0(%arg0: i32) -> (i32, i32) {
    %c0_i32 = arith.constant 0 : i32
    %c0_i32_0 = arith.constant 0 : i32
    return %arg0, %c0_i32 : i32, i32
  }
  func.func @transform_1(%arg0: i32) -> (i32, i32) {
    %c0_i32 = arith.constant 0 : i32
    %c0_i32_0 = arith.constant 0 : i32
    %c0_i32_1 = arith.constant 0 : i32
    return %c0_i32, %c0_i32_0 : i32, i32
  }
  func.func @transform_2(%arg0: i32) -> (i32, i32) {
    %c0_i32 = arith.constant 0 : i32
    %c0_i32_0 = arith.constant 0 : i32
    %c0_i32_1 = arith.constant 0 : i32
    return %c0_i32, %c0_i32_0 : i32, i32
  }
  func.func @transform_3(%arg0: i32) -> (i32, i32) {
    %c0_i32 = arith.constant 0 : i32
    %c0_i32_0 = arith.constant 0 : i32
    %c0_i32_1 = arith.constant 0 : i32
    return %c0_i32, %c0_i32_0 : i32, i32
  }
  func.func @transform_4(%arg0: i32) -> (i32, i32) {
    %c0_i32 = arith.constant 0 : i32
    %c0_i32_0 = arith.constant 0 : i32
    %c0_i32_1 = arith.constant 0 : i32
    return %c0_i32, %c0_i32_0 : i32, i32
  }
  func.func @transform_5(%arg0: i32) -> (i32, i32) {
    %c0_i32 = arith.constant 0 : i32
    %c0_i32_0 = arith.constant 0 : i32
    %c0_i32_1 = arith.constant 0 : i32
    return %c0_i32, %c0_i32_0 : i32, i32
  }
  func.func @transform_6(%arg0: i32) -> (i32, i32) {
    %c0_i32 = arith.constant 0 : i32
    %c0_i32_0 = arith.constant 0 : i32
    %c0_i32_1 = arith.constant 0 : i32
    return %c0_i32, %c0_i32_0 : i32, i32
  }
  func.func @transform_7(%arg0: i32) -> (i32, i32) {
    %c0_i32 = arith.constant 0 : i32
    %c0_i32_0 = arith.constant 0 : i32
    return %arg0, %c0_i32 : i32, i32
  }
}

</mosaic_0001>

<llo_original>
// kernel: mlp_forward.1
$region0: #{mlp_forward.1}
  #allocation0 [shape = 'u32[]', space=smem, size = 0x4, offset = 0x4, fixed_abs, tag = 'smem constant byte address 0x4 - core index']
  #allocation1 [shape = 'u32[144,128]{1,0:T(1,128)}', space=vmem, size = 0x12000, scoped, tag = 'internal scratch']
  %s0 = inlined_call_operand.vmem [shape: bf16[16,128], index: 0, kind: input, shape index: {}]
  %s1 = inlined_call_operand.vmem [shape: bf16[128,128], index: 1, kind: input, shape index: {}]
  %s2 = inlined_call_operand.hbm [shape: f32[1,128], index: 2, kind: input, shape index: {}]
  %s3 = inlined_call_operand.vmem [shape: bf16[128,128], index: 3, kind: input, shape index: {}]
  %s4 = inlined_call_operand.vmem [shape: f32[1,128], index: 4, kind: input, shape index: {}]
  %s5 = inlined_call_operand.hbm [shape: bf16[128,128], index: 5, kind: input, shape index: {}]
  %s6 = inlined_call_operand.vmem [shape: f32[1,128], index: 6, kind: input, shape index: {}]
  %s7 = inlined_call_operand.vmem [shape: bf16[16,128], index: 7, kind: output, shape index: {}]
  %s8 = sld [smem:[#allocation0]]
  $region46: #{mlp_forward.1} parent=0
    _
  %s10 = ssub.s32 1, %s8
  %s11 = scalar_select 0, %s10, %s8
  $region1: #{mlp_forward.1} parent=0
    #allocation2 [shape = 'u8[512]{0}', space=vmem, size = 0x400, scoped, tag = 'input window, operand 2, single buffered']
    #allocation3 [shape = 's32[1]{0}', space=sflag, size = 0x4, scoped, tag = 'scoped memory for mlp_forward.1']
    #allocation4 [shape = 'u8[32768]{0}', space=vmem, size = 0x8000, scoped, tag = 'input window, operand 5, single buffered']
    #allocation5 [shape = 's32[1]{0}', space=sflag, size = 0x4, scoped, tag = 'scoped memory for mlp_forward.1']
    %12 = vsyncpa [#allocation3], 0
    %13 = vsyncpa [#allocation5], 0
    // Predicated region
    $region2: #{mlp_forward.1} parent=1 // pred_check
      _
    $region3: #{mlp_forward.1} parent=1 // pred_check_branch
      %15 = sbr.rel (0) target = $region5
    $region4: #{mlp_forward.1} parent=1 // pred_region
      _
    $region5: #{mlp_forward.1} parent=1 // pred_fallthru
      _
    // Predicated region
    $region6: #{mlp_forward.1} parent=1 // pred_check
      _
    $region7: #{mlp_forward.1} parent=1 // pred_check_branch
      %17 = sbr.rel (0) target = $region9
    $region8: #{mlp_forward.1} parent=1 // pred_region
      _
    $region9: #{mlp_forward.1} parent=1 // pred_fallthru
      _
    // Predicated region
    $region10: #{mlp_forward.1} parent=1 // pred_check
      _
    $region11: #{mlp_forward.1} parent=1 // pred_check_branch
      %19 = sbr.rel (0) target = $region13
    $region12: #{mlp_forward.1} parent=1 // pred_region
      %s21 = ssub.s32 16, 16
      %22 = vsyncadd [#allocation3], %s21
      %s24 = sshll.u32 [#allocation2], 4
      %s25 = int_to_ptr.vmem [resolvable:$true] %s24
      %27 = dma.hbm_to_vmem [thread:$0]  %s2, 16, %s25, [#allocation3]
    $region13: #{mlp_forward.1} parent=1 // pred_fallthru
      _
    // Predicated region
    $region14: #{mlp_forward.1} parent=1 // pred_check
      _
    $region15: #{mlp_forward.1} parent=1 // pred_check_branch
      %29 = sbr.rel (0) target = $region17
    $region16: #{mlp_forward.1} parent=1 // pred_region
      _
    $region17: #{mlp_forward.1} parent=1 // pred_fallthru
      _
    // Predicated region
    $region18: #{mlp_forward.1} parent=1 // pred_check
      _
    $region19: #{mlp_forward.1} parent=1 // pred_check_branch
      %31 = sbr.rel (0) target = $region21
    $region20: #{mlp_forward.1} parent=1 // pred_region
      _
    $region21: #{mlp_forward.1} parent=1 // pred_fallthru
      _
    // Predicated region
    $region22: #{mlp_forward.1} parent=1 // pred_check
      _
    $region23: #{mlp_forward.1} parent=1 // pred_check_branch
      %33 = sbr.rel (0) target = $region25
    $region24: #{mlp_forward.1} parent=1 // pred_region
      %s35 = ssub.s32 1024, 1024
      %36 = vsyncadd [#allocation5], %s35
      %s37 = sshll.u32 [#allocation4], 4
      %s38 = int_to_ptr.vmem [resolvable:$true] %s37
      %43 = dma.hbm_to_vmem [thread:$0]  %s5, 1024, %s38, [#allocation5], 64, 64, 4
    $region25: #{mlp_forward.1} parent=1 // pred_fallthru
      _
    // Predicated region
    $region26: #{mlp_forward.1} parent=1 // pred_check
      _
    $region27: #{mlp_forward.1} parent=1 // pred_check_branch
      %45 = sbr.rel (0) target = $region29
    $region28: #{mlp_forward.1} parent=1 // pred_region
      _
    $region29: #{mlp_forward.1} parent=1 // pred_fallthru
      _
    // Predicated region
    $region30: #{mlp_forward.1} parent=1 // pred_check
      _
    $region31: #{mlp_forward.1} parent=1 // pred_check_branch
      %47 = sbr.rel (0) target = $region33
    $region32: #{mlp_forward.1} parent=1 // pred_region
      %48 = dma.done [#allocation3], 16
    $region33: #{mlp_forward.1} parent=1 // pred_fallthru
      _
    // Predicated region
    $region34: #{mlp_forward.1} parent=1 // pred_check
      _
    $region35: #{mlp_forward.1} parent=1 // pred_check_branch
      %50 = sbr.rel (0) target = $region37
    $region36: #{mlp_forward.1} parent=1 // pred_region
      %51 = dma.done [#allocation5], 1024
    $region37: #{mlp_forward.1} parent=1 // pred_fallthru
      _
    %v53 = vld [vmem:[%s0] sm:$0xf]
    %v54 = vld [vmem:[%s0 + $0x4] sm:$0xf]
    %v55 = vld [vmem:[%s1] sm:$0xf]
    %v56 = vld [vmem:[%s1 + $0x4] sm:$0xf]
    %v57 = vld [vmem:[%s1 + $0x8] sm:$0xf]
    %v58 = vld [vmem:[%s1 + $0xc] sm:$0xf]
    %v59 = vld [vmem:[%s1 + $0x10] sm:$0xf]
    %v60 = vld [vmem:[%s1 + $0x14] sm:$0xf]
    %v61 = vld [vmem:[%s1 + $0x18] sm:$0xf]
    %v62 = vld [vmem:[%s1 + $0x1c] sm:$0xf]
    %v63 = vld [vmem:[%s1 + $0x20] sm:$0xf]
    %v64 = vld [vmem:[%s1 + $0x24] sm:$0xf]
    %v65 = vld [vmem:[%s1 + $0x28] sm:$0xf]
    %v66 = vld [vmem:[%s1 + $0x2c] sm:$0xf]
    %v67 = vld [vmem:[%s1 + $0x30] sm:$0xf]
    %v68 = vld [vmem:[%s1 + $0x34] sm:$0xf]
    %v69 = vld [vmem:[%s1 + $0x38] sm:$0xf]
    %v70 = vld [vmem:[%s1 + $0x3c] sm:$0xf]
    %v71 = vld [vmem:[#allocation2] sm:$0x1]
    %v73 = vlaneseq
    %v74 = vshrl.u32 %v73, 7
    %v75 = vsub.s32 0, %v74
    %v76 = vrot.slane %v71, %v75
    %v80 = vunpack.c.l.b16 %v53
    %v81 = vunpack.c.l.b16 %v54
    %v82 = vpack.c.b16 %v81, %v80
    %v100 = vunpack.c.l.b16 %v55
    %v101 = vunpack.c.l.b16 %v56
    %v102 = vunpack.c.l.b16 %v57
    %v103 = vunpack.c.l.b16 %v58
    %v104 = vunpack.c.l.b16 %v59
    %v105 = vunpack.c.l.b16 %v60
    %v106 = vunpack.c.l.b16 %v61
    %v107 = vunpack.c.l.b16 %v62
    %v108 = vunpack.c.l.b16 %v63
    %v109 = vunpack.c.l.b16 %v64
    %v110 = vunpack.c.l.b16 %v65
    %v111 = vunpack.c.l.b16 %v66
    %v112 = vunpack.c.l.b16 %v67
    %v113 = vunpack.c.l.b16 %v68
    %v114 = vunpack.c.l.b16 %v69
    %v115 = vunpack.c.l.b16 %v70
    %v116 = vpack.c.b16 %v101, %v100
    %v117 = vpack.c.b16 %v103, %v102
    %v118 = vpack.c.b16 %v105, %v104
    %v119 = vpack.c.b16 %v107, %v106
    %v120 = vpack.c.b16 %v109, %v108
    %v121 = vpack.c.b16 %v111, %v110
    %v122 = vpack.c.b16 %v113, %v112
    %v123 = vpack.c.b16 %v115, %v114
    %132 = vmatprep.subr.bf16.mxu0 0
    %133 = vmatpush1.bf16.msra.mxu0 %v116
    %134 = vmatprep.subr.bf16.mxu0 0
    %135 = vmatpush1.bf16.msra.mxu0 %v117
    %136 = vmatprep.subr.bf16.mxu0 0
    %137 = vmatpush1.bf16.msra.mxu0 %v118
    %138 = vmatprep.subr.bf16.mxu0 0
    %139 = vmatpush1.bf16.msra.mxu0 %v119
    %140 = vmatprep.subr.bf16.mxu0 0
    %141 = vmatpush1.bf16.msra.mxu0 %v120
    %142 = vmatprep.subr.bf16.mxu0 0
    %143 = vmatpush1.bf16.msra.mxu0 %v121
    %144 = vmatprep.subr.bf16.mxu0 0
    %145 = vmatpush1.bf16.msra.mxu0 %v122
    %146 = vmatprep.subr.bf16.mxu0 0
    %147 = vmatpush1.bf16.msra.mxu0 %v123
    %148 = vmatprep.subr.bf16.mxu0 0
    %149 = vmatpush1.bf16.msra.mxu0 0
    %150 = vmatprep.subr.bf16.mxu0 0
    %151 = vmatpush1.bf16.msra.mxu0 0
    %152 = vmatprep.subr.bf16.mxu0 0
    %153 = vmatpush1.bf16.msra.mxu0 0
    %154 = vmatprep.subr.bf16.mxu0 0
    %155 = vmatpush1.bf16.msra.mxu0 0
    %156 = vmatprep.subr.bf16.mxu0 0
    %157 = vmatpush1.bf16.msra.mxu0 0
    %158 = vmatprep.subr.bf16.mxu0 0
    %159 = vmatpush1.bf16.msra.mxu0 0
    %160 = vmatprep.subr.bf16.mxu0 0
    %161 = vmatpush1.bf16.msra.mxu0 0
    %162 = vmatprep.subr.bf16.mxu0 0
    %163 = vmatpush1.bf16.msra.mxu0 0
    %164 = vmatprep.mubr.bf16.mxu0 0
    %165 = vmatmul.mubr.bf16.gmra.mrb[0].mxu0 %v82
    %v166 = vpop.f32.mrb[0].mxu0
    %v167 = vadd.f32 %v76, %v166
    %v168 = vpop.f32.mrb[0].mxu0
    %v169 = vpop.f32.mrb[0].mxu0
    %v170 = vadd.f32 %v76, %v169
    %v171 = vpop.f32.mrb[0].mxu0
    %172 = vdwg.mxu0
    %v173 = vmax.f32 %v167, 0.0
    %v174 = vmax.f32 %v170, 0.0
    %v175 = vpack.c.bf16 %v174, %v173
    %v176 = vld [vmem:[%s3] sm:$0xf]
    %v177 = vld [vmem:[%s3 + $0x4] sm:$0xf]
    %v178 = vld [vmem:[%s3 + $0x8] sm:$0xf]
    %v179 = vld [vmem:[%s3 + $0xc] sm:$0xf]
    %v180 = vld [vmem:[%s3 + $0x10] sm:$0xf]
    %v181 = vld [vmem:[%s3 + $0x14] sm:$0xf]
    %v182 = vld [vmem:[%s3 + $0x18] sm:$0xf]
    %v183 = vld [vmem:[%s3 + $0x1c] sm:$0xf]
    %v184 = vld [vmem:[%s3 + $0x20] sm:$0xf]
    %v185 = vld [vmem:[%s3 + $0x24] sm:$0xf]
    %v186 = vld [vmem:[%s3 + $0x28] sm:$0xf]
    %v187 = vld [vmem:[%s3 + $0x2c] sm:$0xf]
    %v188 = vld [vmem:[%s3 + $0x30] sm:$0xf]
    %v189 = vld [vmem:[%s3 + $0x34] sm:$0xf]
    %v190 = vld [vmem:[%s3 + $0x38] sm:$0xf]
    %v191 = vld [vmem:[%s3 + $0x3c] sm:$0xf]
    %v192 = vld [vmem:[%s4] sm:$0x1]
    %v194 = vlaneseq
    %v195 = vshrl.u32 %v194, 7
    %v196 = vsub.s32 0, %v195
    %v197 = vrot.slane %v192, %v196
    %v215 = vunpack.c.l.b16 %v176
    %v216 = vunpack.c.l.b16 %v177
    %v217 = vunpack.c.l.b16 %v178
    %v218 = vunpack.c.l.b16 %v179
    %v219 = vunpack.c.l.b16 %v180
    %v220 = vunpack.c.l.b16 %v181
    %v221 = vunpack.c.l.b16 %v182
    %v222 = vunpack.c.l.b16 %v183
    %v223 = vunpack.c.l.b16 %v184
    %v224 = vunpack.c.l.b16 %v185
    %v225 = vunpack.c.l.b16 %v186
    %v226 = vunpack.c.l.b16 %v187
    %v227 = vunpack.c.l.b16 %v188
    %v228 = vunpack.c.l.b16 %v189
    %v229 = vunpack.c.l.b16 %v190
    %v230 = vunpack.c.l.b16 %v191
    %v231 = vpack.c.b16 %v216, %v215
    %v232 = vpack.c.b16 %v218, %v217
    %v233 = vpack.c.b16 %v220, %v219
    %v234 = vpack.c.b16 %v222, %v221
    %v235 = vpack.c.b16 %v224, %v223
    %v236 = vpack.c.b16 %v226, %v225
    %v237 = vpack.c.b16 %v228, %v227
    %v238 = vpack.c.b16 %v230, %v229
    %247 = vmatprep.subr.bf16.mxu0 0
    %248 = vmatpush1.bf16.msra.mxu0 %v231
    %249 = vmatprep.subr.bf16.mxu0 0
    %250 = vmatpush1.bf16.msra.mxu0 %v232
    %251 = vmatprep.subr.bf16.mxu0 0
    %252 = vmatpush1.bf16.msra.mxu0 %v233
    %253 = vmatprep.subr.bf16.mxu0 0
    %254 = vmatpush1.bf16.msra.mxu0 %v234
    %255 = vmatprep.subr.bf16.mxu0 0
    %256 = vmatpush1.bf16.msra.mxu0 %v235
    %257 = vmatprep.subr.bf16.mxu0 0
    %258 = vmatpush1.bf16.msra.mxu0 %v236
    %259 = vmatprep.subr.bf16.mxu0 0
    %260 = vmatpush1.bf16.msra.mxu0 %v237
    %261 = vmatprep.subr.bf16.mxu0 0
    %262 = vmatpush1.bf16.msra.mxu0 %v238
    %263 = vmatprep.subr.bf16.mxu0 0
    %264 = vmatpush1.bf16.msra.mxu0 0
    %265 = vmatprep.subr.bf16.mxu0 0
    %266 = vmatpush1.bf16.msra.mxu0 0
    %267 = vmatprep.subr.bf16.mxu0 0
    %268 = vmatpush1.bf16.msra.mxu0 0
    %269 = vmatprep.subr.bf16.mxu0 0
    %270 = vmatpush1.bf16.msra.mxu0 0
    %271 = vmatprep.subr.bf16.mxu0 0
    %272 = vmatpush1.bf16.msra.mxu0 0
    %273 = vmatprep.subr.bf16.mxu0 0
    %274 = vmatpush1.bf16.msra.mxu0 0
    %275 = vmatprep.subr.bf16.mxu0 0
    %276 = vmatpush1.bf16.msra.mxu0 0
    %277 = vmatprep.subr.bf16.mxu0 0
    %278 = vmatpush1.bf16.msra.mxu0 0
    %279 = vmatprep.mubr.bf16.mxu0 0
    %280 = vmatmul.mubr.bf16.gmra.mrb[0].mxu0 %v175
    %v281 = vpop.f32.mrb[0].mxu0
    %v282 = vadd.f32 %v197, %v281
    %v283 = vpop.f32.mrb[0].mxu0
    %v284 = vpop.f32.mrb[0].mxu0
    %v285 = vadd.f32 %v197, %v284
    %v286 = vpop.f32.mrb[0].mxu0
    %287 = vdwg.mxu0
    %v288 = vmax.f32 %v282, 0.0
    %v289 = vmax.f32 %v285, 0.0
    %v290 = vpack.c.bf16 %v289, %v288
    %v291 = vld [vmem:[#allocation4] sm:$0xf]
    %v292 = vld [vmem:[#allocation4 + $0x4] sm:$0xf]
    %v293 = vld [vmem:[#allocation4 + $0x8] sm:$0xf]
    %v294 = vld [vmem:[#allocation4 + $0xc] sm:$0xf]
    %v295 = vld [vmem:[#allocation4 + $0x10] sm:$0xf]
    %v296 = vld [vmem:[#allocation4 + $0x14] sm:$0xf]
    %v297 = vld [vmem:[#allocation4 + $0x18] sm:$0xf]
    %v298 = vld [vmem:[#allocation4 + $0x1c] sm:$0xf]
    %v299 = vld [vmem:[#allocation4 + $0x20] sm:$0xf]
    %v300 = vld [vmem:[#allocation4 + $0x24] sm:$0xf]
    %v301 = vld [vmem:[#allocation4 + $0x28] sm:$0xf]
    %v302 = vld [vmem:[#allocation4 + $0x2c] sm:$0xf]
    %v303 = vld [vmem:[#allocation4 + $0x30] sm:$0xf]
    %v304 = vld [vmem:[#allocation4 + $0x34] sm:$0xf]
    %v305 = vld [vmem:[#allocation4 + $0x38] sm:$0xf]
    %v306 = vld [vmem:[#allocation4 + $0x3c] sm:$0xf]
    %v307 = vld [vmem:[%s6] sm:$0x1]
    %v309 = vlaneseq
    %v310 = vshrl.u32 %v309, 7
    %v311 = vsub.s32 0, %v310
    %v312 = vrot.slane %v307, %v311
    %v330 = vunpack.c.l.b16 %v291
    %v331 = vunpack.c.l.b16 %v292
    %v332 = vunpack.c.l.b16 %v293
    %v333 = vunpack.c.l.b16 %v294
    %v334 = vunpack.c.l.b16 %v295
    %v335 = vunpack.c.l.b16 %v296
    %v336 = vunpack.c.l.b16 %v297
    %v337 = vunpack.c.l.b16 %v298
    %v338 = vunpack.c.l.b16 %v299
    %v339 = vunpack.c.l.b16 %v300
    %v340 = vunpack.c.l.b16 %v301
    %v341 = vunpack.c.l.b16 %v302
    %v342 = vunpack.c.l.b16 %v303
    %v343 = vunpack.c.l.b16 %v304
    %v344 = vunpack.c.l.b16 %v305
    %v345 = vunpack.c.l.b16 %v306
    %v346 = vpack.c.b16 %v331, %v330
    %v347 = vpack.c.b16 %v333, %v332
    %v348 = vpack.c.b16 %v335, %v334
    %v349 = vpack.c.b16 %v337, %v336
    %v350 = vpack.c.b16 %v339, %v338
    %v351 = vpack.c.b16 %v341, %v340
    %v352 = vpack.c.b16 %v343, %v342
    %v353 = vpack.c.b16 %v345, %v344
    %362 = vmatprep.subr.bf16.mxu0 0
    %363 = vmatpush1.bf16.msra.mxu0 %v346
    %364 = vmatprep.subr.bf16.mxu0 0
    %365 = vmatpush1.bf16.msra.mxu0 %v347
    %366 = vmatprep.subr.bf16.mxu0 0
    %367 = vmatpush1.bf16.msra.mxu0 %v348
    %368 = vmatprep.subr.bf16.mxu0 0
    %369 = vmatpush1.bf16.msra.mxu0 %v349
    %370 = vmatprep.subr.bf16.mxu0 0
    %371 = vmatpush1.bf16.msra.mxu0 %v350
    %372 = vmatprep.subr.bf16.mxu0 0
    %373 = vmatpush1.bf16.msra.mxu0 %v351
    %374 = vmatprep.subr.bf16.mxu0 0
    %375 = vmatpush1.bf16.msra.mxu0 %v352
    %376 = vmatprep.subr.bf16.mxu0 0
    %377 = vmatpush1.bf16.msra.mxu0 %v353
    %378 = vmatprep.subr.bf16.mxu0 0
    %379 = vmatpush1.bf16.msra.mxu0 0
    %380 = vmatprep.subr.bf16.mxu0 0
    %381 = vmatpush1.bf16.msra.mxu0 0
    %382 = vmatprep.subr.bf16.mxu0 0
    %383 = vmatpush1.bf16.msra.mxu0 0
    %384 = vmatprep.subr.bf16.mxu0 0
    %385 = vmatpush1.bf16.msra.mxu0 0
    %386 = vmatprep.subr.bf16.mxu0 0
    %387 = vmatpush1.bf16.msra.mxu0 0
    %388 = vmatprep.subr.bf16.mxu0 0
    %389 = vmatpush1.bf16.msra.mxu0 0
    %390 = vmatprep.subr.bf16.mxu0 0
    %391 = vmatpush1.bf16.msra.mxu0 0
    %392 = vmatprep.subr.bf16.mxu0 0
    %393 = vmatpush1.bf16.msra.mxu0 0
    %394 = vmatprep.mubr.bf16.mxu0 0
    %395 = vmatmul.mubr.bf16.gmra.mrb[0].mxu0 %v290
    %v396 = vpop.f32.mrb[0].mxu0
    %v397 = vadd.f32 %v312, %v396
    %v398 = vpop.f32.mrb[0].mxu0
    %v399 = vpop.f32.mrb[0].mxu0
    %v400 = vadd.f32 %v312, %v399
    %v401 = vpop.f32.mrb[0].mxu0
    %402 = vdwg.mxu0
    %v403 = vpack.c.bf16 %v400, %v397
    %v405 = vunpack.c.l.b16 %v403
    %v406 = vunpack.c.h.b16 %v403
    %v407 = vpack.c.b16 %v405, %v405
    %v408 = vpack.c.b16 %v406, %v406
    %411 = vst [vmem:[%s7] sm:$0xf] %v407
    %412 = vst [vmem:[%s7 + $0x4] sm:$0xf] %v408
    // Predicated region
    $region38: #{mlp_forward.1} parent=1 // pred_check
      _
    $region39: #{mlp_forward.1} parent=1 // pred_check_branch
      %414 = sbr.rel (0) target = $region41
    $region40: #{mlp_forward.1} parent=1 // pred_region
      _
    $region41: #{mlp_forward.1} parent=1 // pred_fallthru
      _
    // Predicated region
    $region42: #{mlp_forward.1} parent=1 // pred_check
      _
    $region43: #{mlp_forward.1} parent=1 // pred_check_branch
      %416 = sbr.rel (0) target = $region45
    $region44: #{mlp_forward.1} parent=1 // pred_region
      _
    $region45: #{mlp_forward.1} parent=1 // pred_fallthru
      _
    %417 = vsyncpa [#allocation3], 1
    %418 = vsyncpa [#allocation5], 1

</llo_original>
